<compile_context>
chip_gen: v6e
topology: v6e:2x2x1
jax: 0.10.0
libtpu: 0.0.40
codegen_flags: <defaults>
</compile_context>

<pallas_src>
import functools

import jax
import jax.numpy as jnp
from jax import lax
from jax.experimental import pallas as pl
from jax.experimental.pallas import tpu as pltpu


def _focal_weight(one_minus_pt, gamma):
    """(1 - pt) ** gamma, specialized to VPU multiplies for integer gamma."""
    g = float(gamma)
    if g == 0.0:
        return jnp.ones_like(one_minus_pt)
    if g == int(g) and 0 < int(g) <= 8:
        out = one_minus_pt
        for _ in range(int(g) - 1):
            out = out * one_minus_pt
        return out
    # Non-integer gamma: clamp tiny negative rounding noise so pow() stays finite.
    return jnp.maximum(one_minus_pt, 0.0) ** g


def _focal_loss_kernel(x_ref, t_ref, out_ref, *,
                       gamma, ignore_index, n_rows, tile_n):
    i = pl.program_id(0)

    x = x_ref[...].astype(jnp.float32)          # (tile_n, C)
    t = t_ref[...]                              # (tile_n, 1) int32

    # Row-wise log-softmax pieces (classes on the lane axis).
    # NOTE: the overhanging rows of the last block contain unspecified data
    # (x is NOT padded in HBM).  This is safe without a full-tile mask because
    # every reduction below is row-wise (garbage rows only poison themselves)
    # and the final select on `valid` does not propagate NaN/Inf from the
    # unselected branch.
    m = jnp.max(x, axis=1, keepdims=True)                       # (tile_n, 1)
    z = x - m
    e = jnp.exp(z)
    lse = jnp.log(jnp.sum(e, axis=1, keepdims=True))            # (tile_n, 1)

    # Gather only the target column via a one-hot masked row-sum (no per-row
    # dynamic gather on TPU).  Single lane iota; all focal math below is
    # (tile_n, 1) only -> one exp per [row, class] element total.
    col = lax.broadcasted_iota(jnp.int32, z.shape, 1)
    z_t = jnp.sum(jnp.where(col == t, z, 0.0), axis=1, keepdims=True)

    logpt_t = z_t - lse                          # (tile_n, 1)
    pt_t = jnp.exp(logpt_t)
    w = _focal_weight(1.0 - pt_t, gamma)

    # Row validity: exclude ignore_index targets and overhang rows of the
    # last block (garbage targets are excluded by row_valid regardless).
    row = lax.broadcasted_iota(jnp.int32, (tile_n, 1), 0)
    row_valid = (i * tile_n + row) < n_rows      # (tile_n, 1) bool
    valid = (t != ignore_index) & row_valid

    loss_rows = jnp.where(valid, -(w * logpt_t), 0.0)   # NaN of invalid rows discarded
    loss_sum = jnp.sum(loss_rows)
    cnt_sum = jnp.sum(valid.astype(jnp.float32))

    # Per-tile partials packed into one dense (8, 128) output block:
    #   sublane 0, lane 0 -> loss partial ; sublane 1, lane 0 -> valid count.
    r8 = lax.broadcasted_iota(jnp.int32, (8, 128), 0)
    lane0 = lax.broadcasted_iota(jnp.int32, (8, 128), 1) == 0
    out_ref[...] = jnp.where((r8 == 0) & lane0, loss_sum,
                             jnp.where((r8 == 1) & lane0, cnt_sum, 0.0))


def _pick_tile_n(n, c, itemsize, vmem_budget_bytes, min_grid_steps=8):
    # Lane-padded VMEM footprint per row (double-buffered by the pipeline):
    #   x block:      ceil(C/128)*128 * itemsize
    #   target block: (tile_n, 1) int32, lane-padded to 128 lanes.
    # The (8, 128) f32 output block is per-tile and negligible.
    c_pad = max(pl.cdiv(c, 128) * 128, 128)
    bytes_per_row = c_pad * itemsize + 128 * 4
    tile_n = vmem_budget_bytes // (2 * bytes_per_row)
    tile_n = max(8, (tile_n // 8) * 8)
    # Keep at least `min_grid_steps` grid steps when N allows it, so the
    # pipeline has depth and v7x can shard the parallel axis over both TCs.
    steps_cap = max(8, pl.cdiv(pl.cdiv(n, min_grid_steps), 8) * 8)
    return int(min(tile_n, steps_cap))


def focal_loss(x, target, *, gamma=2.0, ignore_index=-100, tile_n=None,
               vmem_budget_bytes=32 * 1024 * 1024):
    """x: [N, C] float, target: [N] int.  Returns scalar mean focal loss.

    NOTE: if every target equals ignore_index the result is NaN (0/0),
    matching PyTorch nll_loss 'mean' semantics.  Out-of-range targets
    (other than ignore_index) silently contribute w*lse instead of raising
    like PyTorch nll_loss would.
    """
    N, C = x.shape
    if tile_n is None:
        tile_n = _pick_tile_n(N, C, jnp.dtype(x.dtype).itemsize,
                              vmem_budget_bytes)
    else:
        tile_n = max(8, (int(tile_n) // 8) * 8)

    grid = pl.cdiv(N, tile_n)
    t2d = target.astype(jnp.int32).reshape(N, 1)

    kernel = functools.partial(_focal_loss_kernel,
                               gamma=float(gamma),
                               ignore_index=int(ignore_index),
                               n_rows=N, tile_n=tile_n)

    partials = pl.pallas_call(
        kernel,
        out_shape=jax.ShapeDtypeStruct((8, 128 * grid), jnp.float32),
        grid_spec=pltpu.PrefetchScalarGridSpec(
            num_scalar_prefetch=0,
            grid=(grid,),
            in_specs=[
                pl.BlockSpec((tile_n, C), lambda i: (i, 0)),
                pl.BlockSpec((tile_n, 1), lambda i: (i, 0)),
            ],
            out_specs=pl.BlockSpec((8, 128), lambda i: (0, i)),
        ),
        compiler_params=pltpu.CompilerParams(
            dimension_semantics=("parallel",),
            vmem_limit_bytes=int(vmem_budget_bytes) + 8 * 1024 * 1024),
    )(x, t2d)

    # Tiny final reduction of per-tile partials in the wrapper.
    return jnp.sum(partials[0]) / jnp.sum(partials[1])


def _focal_loss_ref(x, target, *, gamma=2.0, ignore_index=-100):
    logpt = jax.nn.log_softmax(x.astype(jnp.float32), axis=1)
    pt = jnp.exp(logpt)
    focal = (1.0 - pt) ** gamma * logpt
    picked = jnp.take_along_axis(focal, jnp.clip(target, 0)[:, None], axis=1)[:, 0]
    valid = target != ignore_index
    return jnp.sum(jnp.where(valid, -picked, 0.0)) / jnp.sum(valid)


if __name__ == "__main__":
    key = jax.random.PRNGKey(0)
    N, C = 16, 10
    kx, kt = jax.random.split(key)
    x = jax.random.normal(kx, (N, C), dtype=jnp.float32)
    target = jax.random.randint(kt, (N,), 0, C, dtype=jnp.int32)
    # exercise ignore_index path
    target = target.at[3].set(-100)

    loss = focal_loss(x, target, gamma=2.0, ignore_index=-100)
    jax.block_until_ready(loss)
    ref = _focal_loss_ref(x, target, gamma=2.0, ignore_index=-100)
    assert jnp.allclose(loss, ref, rtol=1e-5, atol=1e-5), (loss, ref)

    # Second config: N not a multiple of the tile (overhang / garbage-row path,
    # no in-kernel full-tile mask) and an explicit small tile so the grid has
    # several parallel steps.
    N2, C2 = 37, 10
    kx2, kt2 = jax.random.split(kt)
    x2 = jax.random.normal(kx2, (N2, C2), dtype=jnp.float32)
    target2 = jax.random.randint(kt2, (N2,), 0, C2, dtype=jnp.int32)
    target2 = target2.at[0].set(-100)
    loss2 = focal_loss(x2, target2, gamma=2.0, ignore_index=-100, tile_n=16)
    jax.block_until_ready(loss2)
    ref2 = _focal_loss_ref(x2, target2, gamma=2.0, ignore_index=-100)
    assert jnp.allclose(loss2, ref2, rtol=1e-5, atol=1e-5), (loss2, ref2)

    print("KERNEL_OK")
</pallas_src>

<mosaic_0001>
module attributes {stable_mosaic.version = 11 : i64} {
  func.func @_focal_loss_kernel(%arg0: i32, %arg1: memref<8x10xf32, #tpu.memory_space<vmem>>, %arg2: memref<8x1xi32, #tpu.memory_space<vmem>>, %arg3: memref<8x128xf32, #tpu.memory_space<vmem>>) attributes {dimension_semantics = [#tpu.dimension_semantics<parallel>], iteration_bounds = array<i64: 2>, scalar_prefetch = 0 : i64, scratch_operands = 0 : i64, tpu.core_type = #tpu.core_type<tc>, window_params = [{transform_indices = @transform_0, window_bounds = array<i64: 8, 10>}, {transform_indices = @transform_1, window_bounds = array<i64: 8, 1>}, {transform_indices = @transform_2, window_bounds = array<i64: 8, 128>}]} {
    %c0 = arith.constant 0 : index
    %c0_0 = arith.constant 0 : index
    %0 = vector.load %arg1[%c0, %c0_0] : memref<8x10xf32, #tpu.memory_space<vmem>>, vector<8x10xf32>
    %c0_1 = arith.constant 0 : index
    %c0_2 = arith.constant 0 : index
    %1 = vector.load %arg2[%c0_1, %c0_2] : memref<8x1xi32, #tpu.memory_space<vmem>>, vector<8x1xi32>
    %cst = arith.constant dense<0xFF800000> : vector<8xf32>
    %2 = vector.multi_reduction <maximumf>, %0, %cst [1] : vector<8x10xf32> to vector<8xf32>
    %3 = vector.shape_cast %2 : vector<8xf32> to vector<8x1xf32>
    %4 = vector.broadcast %3 : vector<8x1xf32> to vector<8x10xf32>
    %5 = arith.subf %0, %4 : vector<8x10xf32>
    %6 = math.exp %5 : vector<8x10xf32>
    %cst_3 = arith.constant dense<0.000000e+00> : vector<8xf32>
    %7 = vector.multi_reduction <add>, %6, %cst_3 [1] : vector<8x10xf32> to vector<8xf32>
    %8 = vector.shape_cast %7 : vector<8xf32> to vector<8x1xf32>
    %9 = math.log %8 : vector<8x1xf32>
    %10 = tpu.iota {dimensions = array<i32: 1>} : vector<8x10xi32>
    %11 = vector.broadcast %1 : vector<8x1xi32> to vector<8x10xi32>
    %12 = arith.cmpi eq, %10, %11 : vector<8x10xi32>
    %cst_4 = arith.constant 0.000000e+00 : f32
    %13 = vector.broadcast %cst_4 : f32 to vector<8x10xf32>
    %14 = arith.select %12, %5, %13 : vector<8x10xi1>, vector<8x10xf32>
    %cst_5 = arith.constant dense<0.000000e+00> : vector<8xf32>
    %15 = vector.multi_reduction <add>, %14, %cst_5 [1] : vector<8x10xf32> to vector<8xf32>
    %16 = vector.shape_cast %15 : vector<8xf32> to vector<8x1xf32>
    %17 = arith.subf %16, %9 : vector<8x1xf32>
    %18 = math.exp %17 : vector<8x1xf32>
    %cst_6 = arith.constant 1.000000e+00 : f32
    %19 = vector.broadcast %cst_6 : f32 to vector<8x1xf32>
    %20 = arith.subf %19, %18 : vector<8x1xf32>
    %21 = arith.mulf %20, %20 : vector<8x1xf32>
    %22 = tpu.iota {dimensions = array<i32: 0>} : vector<8x1xi32>
    %c8_i32 = arith.constant 8 : i32
    %23 = arith.muli %arg0, %c8_i32 : i32
    %24 = vector.broadcast %23 : i32 to vector<8x1xi32>
    %25 = arith.addi %24, %22 : vector<8x1xi32>
    %c16_i32 = arith.constant 16 : i32
    %26 = vector.broadcast %c16_i32 : i32 to vector<8x1xi32>
    %27 = arith.cmpi slt, %25, %26 : vector<8x1xi32>
    %c-100_i32 = arith.constant -100 : i32
    %28 = vector.broadcast %c-100_i32 : i32 to vector<8x1xi32>
    %29 = arith.cmpi ne, %1, %28 : vector<8x1xi32>
    %30 = arith.andi %29, %27 : vector<8x1xi1>
    %31 = arith.mulf %21, %17 : vector<8x1xf32>
    %cst_7 = arith.constant 0.000000e+00 : f32
    %32 = vector.broadcast %cst_7 : f32 to vector<8x1xf32>
    %33 = arith.subf %32, %31 : vector<8x1xf32>
    %cst_8 = arith.constant 0.000000e+00 : f32
    %34 = vector.broadcast %cst_8 : f32 to vector<8x1xf32>
    %35 = arith.select %30, %33, %34 : vector<8x1xi1>, vector<8x1xf32>
    %36 = vector.shape_cast %35 : vector<8x1xf32> to vector<1x8x1xf32>
    %cst_9 = arith.constant dense<0.000000e+00> : vector<1xf32>
    %37 = vector.multi_reduction <add>, %36, %cst_9 [1, 2] : vector<1x8x1xf32> to vector<1xf32>
    %38 = vector.shape_cast %37 : vector<1xf32> to vector<1x1x1xf32>
    %39 = vector.extract %38[0, 0, 0] : f32 from vector<1x1x1xf32>
    %40 = arith.extui %30 : vector<8x1xi1> to vector<8x1xi32>
    %41 = arith.sitofp %40 : vector<8x1xi32> to vector<8x1xf32>
    %42 = vector.shape_cast %41 : vector<8x1xf32> to vector<1x8x1xf32>
    %cst_10 = arith.constant dense<0.000000e+00> : vector<1xf32>
    %43 = vector.multi_reduction <add>, %42, %cst_10 [1, 2] : vector<1x8x1xf32> to vector<1xf32>
    %44 = vector.shape_cast %43 : vector<1xf32> to vector<1x1x1xf32>
    %45 = vector.extract %44[0, 0, 0] : f32 from vector<1x1x1xf32>
    %46 = tpu.iota {dimensions = array<i32: 0>} : vector<8x128xi32>
    %47 = tpu.iota {dimensions = array<i32: 1>} : vector<8x128xi32>
    %c0_i32 = arith.constant 0 : i32
    %48 = vector.broadcast %c0_i32 : i32 to vector<8x128xi32>
    %49 = arith.cmpi eq, %47, %48 : vector<8x128xi32>
    %c0_i32_11 = arith.constant 0 : i32
    %50 = vector.broadcast %c0_i32_11 : i32 to vector<8x128xi32>
    %51 = arith.cmpi eq, %46, %50 : vector<8x128xi32>
    %52 = arith.andi %51, %49 : vector<8x128xi1>
    %c1_i32 = arith.constant 1 : i32
    %53 = vector.broadcast %c1_i32 : i32 to vector<8x128xi32>
    %54 = arith.cmpi eq, %46, %53 : vector<8x128xi32>
    %55 = arith.andi %54, %49 : vector<8x128xi1>
    %cst_12 = arith.constant 0.000000e+00 : f32
    %56 = vector.broadcast %45 : f32 to vector<8x128xf32>
    %57 = vector.broadcast %cst_12 : f32 to vector<8x128xf32>
    %58 = arith.select %55, %56, %57 : vector<8x128xi1>, vector<8x128xf32>
    %59 = vector.broadcast %39 : f32 to vector<8x128xf32>
    %60 = arith.select %52, %59, %58 : vector<8x128xi1>, vector<8x128xf32>
    %c0_13 = arith.constant 0 : index
    %c0_14 = arith.constant 0 : index
    %61 = vector.load %arg3[%c0_13, %c0_14] : memref<8x128xf32, #tpu.memory_space<vmem>>, vector<8x128xf32>
    tpu.vector_store %arg3[%c0_13, %c0_14], %60 {strides = array<i32>} : memref<8x128xf32, #tpu.memory_space<vmem>>, vector<8x128xf32>,
    return
  }
  func.func @transform_0(%arg0: i32) -> (i32, i32) {
    %c0_i32 = arith.constant 0 : i32
    %c0_i32_0 = arith.constant 0 : i32
    return %arg0, %c0_i32 : i32, i32
  }
  func.func @transform_1(%arg0: i32) -> (i32, i32) {
    %c0_i32 = arith.constant 0 : i32
    %c0_i32_0 = arith.constant 0 : i32
    return %arg0, %c0_i32 : i32, i32
  }
  func.func @transform_2(%arg0: i32) -> (i32, i32) {
    %c0_i32 = arith.constant 0 : i32
    %c0_i32_0 = arith.constant 0 : i32
    return %c0_i32, %arg0 : i32, i32
  }
}

</mosaic_0001>

<llo_original>
// kernel: tpu_custom_call.1
$region0: #{tpu_custom_call.1}
  #allocation0 [shape = 'u32[]', space=smem, size = 0x4, offset = 0x4, fixed_abs, tag = 'smem constant byte address 0x4 - core index']
  #allocation1 [shape = 'u32[144,128]{1,0:T(1,128)}', space=vmem, size = 0x12000, scoped, tag = 'internal scratch']
  %s0 = inlined_call_operand.vmem [shape: f32[16,10], index: 0, kind: input, shape index: {}]
  %s1 = inlined_call_operand.vmem [shape: s32[16,1], index: 1, kind: input, shape index: {}]
  %s2 = inlined_call_operand.hbm [shape: f32[8,256], index: 2, kind: output, shape index: {}]
  %s3 = sld [smem:[#allocation0]]
  $region41: #{tpu_custom_call.1} parent=0
    _
  %s5 = ssub.s32 1, %s3
  %s6 = scalar_select 0, %s5, %s3
  $region1: #{tpu_custom_call.1} parent=0
    #allocation2 [shape = 'u8[8192]{0}', space=vmem, size = 0x2000, scoped, tag = 'output window, operand 0']
    #allocation3 [shape = 's32[2]{0}', space=sflag, size = 0x8, scoped, tag = 'scoped memory for tpu_custom_call.1']
    %7 = vsyncpa [#allocation3], 0
    %s8 = scalar_lea.sflag [#allocation3], 1
    %9 = vsyncpa %s8, 0
    loop: start=0, step=1, limit=4
    $region2: #{tpu_custom_call.1} parent=1 // loop_pre_header
      _
    $region3: #{tpu_custom_call.1} parent=1 // loop_header
      %s11 = sphi 0, %s15
      %p12 = scmp.ge.s32.totalorder %s11, 4
      %s21 = sphi 0, %s23
      %s24 = sphi 0, %s21
      %s25 = sphi 0, %s24
      %s41 = sphi 0, %s25
      %s47 = sphi 0, %s49
      %s50 = sphi 0, %s47
      %s51 = sphi 0, %s50
      %s67 = sphi 0, %s51
      %s73 = sphi 0, %s75
      %s76 = sphi 0, %s73
      %s77 = sphi 0, %s76
      %s93 = sphi 0, %s77
    $region4: #{tpu_custom_call.1} parent=1 // loop_header_branch
      %14 = sbr.rel (%p12) target = $region8
    $region5: #{tpu_custom_call.1} parent=1 // loop_body
      %s16 = ssub.s32 %s11, 1
      %s17 = ssub.s32 %s11, 2
      %s18 = sadd.s32 %s11, 1
      %s19 = ssub.s32 %s11, %s18
      %p20 = scmp.eq.s32.totalorder %s19, 0
      %s22 = sadd.s32 %s21, 1
      %s23 = scalar_select %p20, %s21, %s22
      %p26 = pneg %p20
      %p27 = scmp.eq.s32.totalorder %s11, 1
      %p28 = por %p26, %p27
      %p29 = scmp.ne.s32.totalorder %s21, %s24
      %p30 = scmp.eq.s32.totalorder %s11, 0
      %p31 = por %p29, %p30
      %p32 = scmp.ne.s32.totalorder %s21, %s24
      %p33 = scmp.eq.s32.totalorder %s16, 1
      %p34 = por %p32, %p33
      %p35 = scmp.ne.s32.totalorder %s24, %s25
      %p36 = scmp.eq.s32.totalorder %s16, 0
      %p37 = por %p35, %p36
      %p38 = scmp.ne.s32.totalorder %s24, %s25
      %p39 = scmp.eq.s32.totalorder %s17, 1
      %p40 = por %p38, %p39
      %p42 = scmp.ne.s32.totalorder %s25, %s41
      %p43 = scmp.eq.s32.totalorder %s17, 0
      %p44 = por %p42, %p43
      %s45 = ssub.s32 %s11, %s18
      %p46 = scmp.eq.s32.totalorder %s45, 0
      %s48 = sadd.s32 %s47, 1
      %s49 = scalar_select %p46, %s47, %s48
      %p52 = pneg %p46
      %p53 = scmp.eq.s32.totalorder %s11, 1
      %p54 = por %p52, %p53
      %p55 = scmp.ne.s32.totalorder %s47, %s50
      %p56 = scmp.eq.s32.totalorder %s11, 0
      %p57 = por %p55, %p56
      %p58 = scmp.ne.s32.totalorder %s47, %s50
      %p59 = scmp.eq.s32.totalorder %s16, 1
      %p60 = por %p58, %p59
      %p61 = scmp.ne.s32.totalorder %s50, %s51
      %p62 = scmp.eq.s32.totalorder %s16, 0
      %p63 = por %p61, %p62
      %p64 = scmp.ne.s32.totalorder %s50, %s51
      %p65 = scmp.eq.s32.totalorder %s17, 1
      %p66 = por %p64, %p65
      %p68 = scmp.ne.s32.totalorder %s51, %s67
      %p69 = scmp.eq.s32.totalorder %s17, 0
      %p70 = por %p68, %p69
      %s71 = ssub.s32 %s11, %s18
      %p72 = scmp.eq.s32.totalorder %s71, 0
      %s74 = sadd.s32 %s73, 1
      %s75 = scalar_select %p72, %s73, %s74
      %p78 = pneg %p72
      %p79 = scmp.eq.s32.totalorder %s11, 1
      %p80 = por %p78, %p79
      %p81 = scmp.ne.s32.totalorder %s73, %s76
      %p82 = scmp.eq.s32.totalorder %s11, 0
      %p83 = por %p81, %p82
      %p84 = scmp.ne.s32.totalorder %s73, %s76
      %p85 = scmp.eq.s32.totalorder %s16, 1
      %p86 = por %p84, %p85
      %p87 = scmp.ne.s32.totalorder %s76, %s77
      %p88 = scmp.eq.s32.totalorder %s16, 0
      %p89 = por %p87, %p88
      %p90 = scmp.ne.s32.totalorder %s76, %s77
      %p91 = scmp.eq.s32.totalorder %s17, 1
      %p92 = por %p90, %p91
      %p94 = scmp.ne.s32.totalorder %s77, %s93
      %p95 = scmp.eq.s32.totalorder %s17, 0
      %p96 = por %p94, %p95
      %p97 = scmp.le.s32.totalorder 1, %s11
      %p98 = scmp.lt.s32.totalorder %s11, 3
      %p99 = pnand %p97, %p98
      %p100 = pneg %p99
      // Predicated region
      $region9: #{tpu_custom_call.1} parent=5 // pred_check
        _
      $region10: #{tpu_custom_call.1} parent=5 // pred_check_branch
        %102 = sbr.rel (%p99) target = $region12
      $region11: #{tpu_custom_call.1} parent=5 // pred_region
        %s103 = ssub.s32 %s11, 1
      $region12: #{tpu_custom_call.1} parent=5 // pred_fallthru
        _
      %p104 = scmp.lt.s32.totalorder %s11, 2
      // Predicated region
      $region13: #{tpu_custom_call.1} parent=5 // pred_check
        %p105 = pneg %p104
      $region14: #{tpu_custom_call.1} parent=5 // pred_check_branch
        %107 = sbr.rel (%p105) target = $region16
      $region15: #{tpu_custom_call.1} parent=5 // pred_region
        // Predicated region
        $region17: #{tpu_custom_call.1} parent=15 // pred_check
          %p108 = pneg %p31
        $region18: #{tpu_custom_call.1} parent=15 // pred_check_branch
          %110 = sbr.rel (%p108) target = $region20
        $region19: #{tpu_custom_call.1} parent=15 // pred_region
          %p111 = scmp.lt.s32.totalorder %s11, 1
          %s112 = scalar_select %p111, %s11, 1
          %s113 = smul.addr %s112, 8
          %s114 = scalar_lea.vmem %s0, %s113
        $region20: #{tpu_custom_call.1} parent=15 // pred_fallthru
          _
        // Predicated region
        $region21: #{tpu_custom_call.1} parent=15 // pred_check
          %p115 = pneg %p57
        $region22: #{tpu_custom_call.1} parent=15 // pred_check_branch
          %117 = sbr.rel (%p115) target = $region24
        $region23: #{tpu_custom_call.1} parent=15 // pred_region
          %p118 = scmp.lt.s32.totalorder %s11, 1
          %s119 = scalar_select %p118, %s11, 1
          %s120 = smul.addr %s119, 8
          %s121 = scalar_lea.vmem %s1, %s120
        $region24: #{tpu_custom_call.1} parent=15 // pred_fallthru
          _
      $region16: #{tpu_custom_call.1} parent=5 // pred_fallthru
        _
      %p122 = scmp.le.s32.totalorder 1, %s11
      %p123 = scmp.lt.s32.totalorder %s11, 3
      %p124 = pnand %p122, %p123
      %p125 = pneg %p124
      // Predicated region
      $region25: #{tpu_custom_call.1} parent=5 // pred_check
        _
      $region26: #{tpu_custom_call.1} parent=5 // pred_check_branch
        %127 = sbr.rel (%p124) target = $region28
      $region27: #{tpu_custom_call.1} parent=5 // pred_region
        %s128 = ssub.s32 %s11, 1
        %p129 = scmp.lt.s32.totalorder %s16, 1
        %s130 = scalar_select %p129, %s16, 1
        %s131 = smul.addr %s130, 8
        %s132 = scalar_lea.vmem %s0, %s131
        %p133 = pneg %p37
        %p134 = pneg %p34
        %p135 = scmp.lt.s32.totalorder %s16, 1
        %s136 = scalar_select %p135, %s16, 1
        %s137 = smul.addr %s136, 8
        %s138 = scalar_lea.vmem %s1, %s137
        %p139 = pneg %p63
        %p140 = pneg %p60
        %p141 = pneg %p89
        %p142 = pneg %p86
        %s143 = sand.u32 %s76, 1
        %s144 = scalar_lea.sflag [#allocation3], %s143
        %s145 = sand.u32 %s76, 1
        %s146 = smul.addr %s145, 8
        %s147 = scalar_lea.vmem [#allocation2], %s146
        %p148 = scmp.lt.s32.totalorder %s16, 1
        %s149 = scalar_select %p148, %s16, 1
        %s150 = smul.addr %s149, 8
        %s151 = scalar_lea.vmem %s0, %s150
        %p152 = scmp.lt.s32.totalorder %s16, 1
        %s153 = scalar_select %p152, %s16, 1
        %s154 = smul.addr %s153, 8
        %s155 = scalar_lea.vmem %s1, %s154
        %v156 = vld [vmem:[%s151] sm:$0xff]
        %v157 = vld [vmem:[%s155] sm:$0xff]
        %vm158 = vcmask 80896
        %v159 = vsel %vm158, %v156, -inf
        %160 = vmax.xlane.f32.xlu0 %v159
        %v161 = vpop.xlane.xlu0 %160
        %v162 = vsub.f32 %v156, %v161
        %v163 = vmul.f32 %v162, 1.442695
        %v164 = vpow.pop %v163
        %v165 = vsel %vm158, %v164, 0.0
        %166 = vadd.xlane.f32.xlu0 %v165
        %v167 = vpop.xlane.xlu0 %166
        %v168 = vlog2.pop %v167
        %v169 = vmul.f32 %v168, 0.6931472
        %v170 = vlaneseq
        %v171 = vand.u32 %v170, 127
        %172 = vset.pattern.permute.xlu0 0
        %173 = vperm.xlu0 %172, %v157
        %v174 = vpop.permute.xlu0 %173
        %vm175 = vcmp.eq.s32.totalorder %v171, %v174
        %v176 = vsel %vm175, %v162, 0.0
        %v177 = vsel %vm158, %v176, 0.0
        %178 = vadd.xlane.f32.xlu0 %v177
        %v179 = vpop.xlane.xlu0 %178
        %v180 = vsub.f32 %v179, %v169
        %v181 = vmul.f32 %v180, 1.442695
        %v182 = vpow.pop %v181
        %v183 = vsub.f32 1.0, %v182
        %v184 = vmul.f32 %v183, %v183
        %v185 = vlaneseq
        %v186 = vshrl.u32 %v185, 7
        %s187 = smul.u32 %s16, 8
        %v188 = vstv %s187
        %v189 = vadd.s32 %v188, %v186
        %vm190 = vcmp.lt.s32.totalorder %v189, 16
        %vm191 = vcmp.ne.s32.totalorder %v157, 4294967196
        %vm192 = vmand %vm191, %vm190
        %v193 = vmul.f32 %v184, %v180
        %v194 = vsub.f32 0.0, %v193
        %v195 = vsel %vm192, %v194, 0.0
        %vm196 = vcmask 7168
        %v197 = vsel %vm196, %v195, 0.0
        %198 = vadd.xlane.f32.xlu0 %v197
        %v199 = vpop.xlane.xlu0 %198
        %v200 = vrot.slane %v199, 4
        %v201 = vadd.f32 %v199, %v200
        %v202 = vrot.slane %v201, 2
        %v203 = vadd.f32 %v201, %v202
        %v204 = vrot.slane %v203, 1
        %v205 = vadd.f32 %v203, %v204
        %s206 = vtos %v205
        %v207 = vsel %vm192, 1, 0
        %v208 = vcvt.s32.f32 %v207
        %v209 = vsel %vm196, %v208, 0.0
        %210 = vadd.xlane.f32.xlu0 %v209
        %v211 = vpop.xlane.xlu0 %210
        %v212 = vrot.slane %v211, 4
        %v213 = vadd.f32 %v211, %v212
        %v214 = vrot.slane %v213, 2
        %v215 = vadd.f32 %v213, %v214
        %v216 = vrot.slane %v215, 1
        %v217 = vadd.f32 %v215, %v216
        %s218 = vtos %v217
        %vm219 = vcmp.eq.s32.totalorder %v171, 0
        %vm220 = vcmp.eq.s32.totalorder %v186, 0
        %vm221 = vmand %vm220, %vm219
        %vm222 = vcmp.eq.s32.totalorder %v186, 1
        %vm223 = vmand %vm222, %vm219
        %v224 = vstv %s218
        %v225 = vsel %vm223, %v224, 0.0
        %v226 = vstv %s206
        %v227 = vsel %vm221, %v226, %v225
        %228 = vst [vmem:[%s147] sm:$0xff] %v227
        %s229 = sand.u32 %s76, 1
        %s230 = scalar_lea.sflag [#allocation3], %s229
        %s231 = sand.u32 %s76, 1
        %s232 = smul.addr %s231, 8
        %s233 = scalar_lea.vmem [#allocation2], %s232
        // Predicated region
        $region29: #{tpu_custom_call.1} parent=27 // pred_check
          %p234 = pneg %p86
        $region30: #{tpu_custom_call.1} parent=27 // pred_check_branch
          %236 = sbr.rel (%p234) target = $region32
        $region31: #{tpu_custom_call.1} parent=27 // pred_region
          %s238 = ssub.s32 128, 128
          %239 = vsyncadd %s230, %s238
          %s240 = smul.addr %s16, 128
          %s241 = scalar_lea.hbm %s2, %s240
          %s243 = sshll.u32 %s233, 4
          %s244 = int_to_ptr.vmem [resolvable:$true] %s243
          %246 = dma.vmem_to_hbm [thread:$0]  %s244, 128, %s241, %s230
        $region32: #{tpu_custom_call.1} parent=27 // pred_fallthru
          _
      $region28: #{tpu_custom_call.1} parent=5 // pred_fallthru
        _
      %p247 = scmp.le.s32.totalorder 2, %s11
      // Predicated region
      $region33: #{tpu_custom_call.1} parent=5 // pred_check
        %p248 = pneg %p247
      $region34: #{tpu_custom_call.1} parent=5 // pred_check_branch
        %250 = sbr.rel (%p248) target = $region36
      $region35: #{tpu_custom_call.1} parent=5 // pred_region
        %s251 = ssub.s32 %s11, 2
        // Predicated region
        $region37: #{tpu_custom_call.1} parent=35 // pred_check
          %p252 = pneg %p92
        $region38: #{tpu_custom_call.1} parent=35 // pred_check_branch
          %254 = sbr.rel (%p252) target = $region40
        $region39: #{tpu_custom_call.1} parent=35 // pred_region
          %s255 = sand.u32 %s77, 1
          %s256 = scalar_lea.sflag [#allocation3], %s255
          %s257 = sand.u32 %s77, 1
          %s258 = smul.addr %s257, 8
          %s259 = scalar_lea.vmem [#allocation2], %s258
          %260 = dma.done %s256, 128
        $region40: #{tpu_custom_call.1} parent=35 // pred_fallthru
          _
      $region36: #{tpu_custom_call.1} parent=5 // pred_fallthru
        _
    $region6: #{tpu_custom_call.1} parent=1 // loop_footer
      %s15 = sadd.s32 1, %s11
    $region7: #{tpu_custom_call.1} parent=1 // loop_footer_branch
      %10 = sbr.rel target = $region3
    $region8: #{tpu_custom_call.1} parent=1 // loop_exit
      _
    %261 = vsyncpa [#allocation3], 1
    %s262 = scalar_lea.sflag [#allocation3], 1
    %263 = vsyncpa %s262, 1

</llo_original>
